<compile_context>
chip_gen: v7x
topology: tpu7x:2x2x1
jax: 0.10.0
libtpu: 0.0.40
codegen_flags: <defaults>
</compile_context>

<pallas_src>
import jax
import jax.numpy as jnp
from jax.experimental import pallas as pl
from jax.experimental.pallas import tpu as pltpu


def _round_up(x: int, m: int) -> int:
    return ((x + m - 1) // m) * m


def decoder_kernel(x_ref, w1_ref, b1_ref, w2_ref, b2_ref, w3_ref, b3_ref,
                   o_ref, h1_ref, h2_ref):
    # x tile: (TILE_B, in) bf16.  Weights: (in, H), (H, H), (H, N_pad) bf16, resident.
    # Biases: (1, H)/(1, N_pad) f32.  Three chained MXU matmuls, f32 accumulation.
    x = x_ref[...]
    h1_ref[...] = (
        jnp.dot(x, w1_ref[...], preferred_element_type=jnp.float32) + b1_ref[...]
    ).astype(h1_ref.dtype)
    h2_ref[...] = (
        jnp.dot(h1_ref[...], w2_ref[...], preferred_element_type=jnp.float32) + b2_ref[...]
    ).astype(h2_ref.dtype)
    o_ref[...] = (
        jnp.dot(h2_ref[...], w3_ref[...], preferred_element_type=jnp.float32) + b3_ref[...]
    ).astype(o_ref.dtype)


def prepare_decoder_params(params):
    """One-time conversion from PyTorch-convention params to kernel layout.

    Transposes weights to (in, out), casts them to bf16, pads the final output
    feature axis to a multiple of 128 lanes, and reshapes biases to (1, out) f32
    rows.  Do this ONCE (outside the per-step hot path)."""
    out_features = params["w3"].shape[0]
    n_pad = _round_up(out_features, 128)

    w1t = params["w1"].T.astype(jnp.bfloat16)                      # (in, H)
    w2t = params["w2"].T.astype(jnp.bfloat16)                      # (H, H)
    w3t = jnp.pad(params["w3"].T.astype(jnp.bfloat16),             # (H, N_pad)
                  ((0, 0), (0, n_pad - out_features)))
    b1 = params["b1"].astype(jnp.float32).reshape(1, -1)           # (1, H)
    b2 = params["b2"].astype(jnp.float32).reshape(1, -1)           # (1, H)
    b3 = jnp.pad(params["b3"].astype(jnp.float32),
                 (0, n_pad - out_features)).reshape(1, -1)         # (1, N_pad)
    return {"w1t": w1t, "b1": b1, "w2t": w2t, "b2": b2, "w3t": w3t, "b3": b3,
            "out_features": out_features}


def decoder_forward(x, prepared, tile_b: int = 256):
    """x: (B, in_features) f32.  prepared: output of prepare_decoder_params."""
    B, in_features = x.shape
    H = prepared["w1t"].shape[1]
    n_pad = prepared["w3t"].shape[1]
    out_features = prepared["out_features"]

    # Batch tile: multiple of 8 sublanes; pad B up to a whole number of tiles.
    tile_b = _round_up(max(8, min(tile_b, B)), 8)
    bp = _round_up(B, tile_b)

    xb = x.astype(jnp.bfloat16)
    if bp != B:
        xb = jnp.pad(xb, ((0, bp - B), (0, 0)))
    grid = (bp // tile_b,)

    flops = 2 * bp * (in_features * H + H * H + H * n_pad)
    bytes_accessed = (
        xb.size * 2
        + (prepared["w1t"].size + prepared["w2t"].size + prepared["w3t"].size) * 2
        + (prepared["b1"].size + prepared["b2"].size + prepared["b3"].size) * 4
        + bp * n_pad * 4
    )

    # TODO(synk): for vocab-sized out_features, additionally tile the W3 output
    # axis (grid over N) and set vmem_limit_bytes so the working set fits v7x's
    # 64 MiB VMEM; at these decoder sizes whole weights fit comfortably.
    out = pl.pallas_call(
        decoder_kernel,
        out_shape=jax.ShapeDtypeStruct((bp, n_pad), jnp.float32),
        grid_spec=pltpu.PrefetchScalarGridSpec(
            num_scalar_prefetch=0,
            grid=grid,
            in_specs=[
                pl.BlockSpec((tile_b, in_features), lambda i: (i, 0)),  # x tile
                pl.BlockSpec((in_features, H), lambda i: (0, 0)),       # W1^T (resident)
                pl.BlockSpec((1, H), lambda i: (0, 0)),                 # b1
                pl.BlockSpec((H, H), lambda i: (0, 0)),                 # W2^T (resident)
                pl.BlockSpec((1, H), lambda i: (0, 0)),                 # b2
                pl.BlockSpec((H, n_pad), lambda i: (0, 0)),             # W3^T (resident)
                pl.BlockSpec((1, n_pad), lambda i: (0, 0)),             # b3
            ],
            out_specs=pl.BlockSpec((tile_b, n_pad), lambda i: (i, 0)),
            scratch_shapes=[
                pltpu.VMEM((tile_b, H), jnp.bfloat16),   # h1
                pltpu.VMEM((tile_b, H), jnp.bfloat16),   # h2
            ],
        ),
        compiler_params=pltpu.CompilerParams(
            dimension_semantics=("parallel",),
        ),
        cost_estimate=pl.CostEstimate(
            flops=flops, transcendentals=0, bytes_accessed=bytes_accessed),
    )(xb, prepared["w1t"], prepared["b1"], prepared["w2t"], prepared["b2"],
      prepared["w3t"], prepared["b3"])

    return out[:B, :out_features]


def init_decoder_params(key, in_features, out_features, hidden_dim=128):
    """Deterministic init matching the PyTorch module's shapes.
    kaiming_normal_ (fan_in mode, gain=sqrt(2)) for weights, zeros for biases."""
    k1, k2, k3 = jax.random.split(key, 3)

    def kaiming(k, fan_out, fan_in):
        std = jnp.sqrt(2.0 / fan_in)
        return jax.random.normal(k, (fan_out, fan_in), dtype=jnp.float32) * std

    return {
        "w1": kaiming(k1, hidden_dim, in_features),
        "b1": jnp.zeros((hidden_dim,), jnp.float32),
        "w2": kaiming(k2, hidden_dim, hidden_dim),
        "b2": jnp.zeros((hidden_dim,), jnp.float32),
        "w3": kaiming(k3, out_features, hidden_dim),
        "b3": jnp.zeros((out_features,), jnp.float32),
    }


if __name__ == "__main__":
    key = jax.random.PRNGKey(0)
    kx, kp = jax.random.split(key)

    batch = 200          # not a multiple of the tile -> exercises padding + grid>1
    in_features = 32
    out_features = 16
    hidden_dim = 128

    x = jax.random.normal(kx, (batch, in_features), dtype=jnp.float32)
    params = init_decoder_params(kp, in_features, out_features, hidden_dim)
    prepared = prepare_decoder_params(params)   # one-time layout/cast prep

    out = decoder_forward(x, prepared, tile_b=64)
    out = jax.block_until_ready(out)
    assert out.shape == (batch, out_features)

    # Precision-matched JAX reference (bf16 matmul inputs, f32 accumulation) —
    # should agree with the kernel to roundoff.
    xb = x.astype(jnp.bfloat16)
    r1 = (jnp.dot(xb, prepared["w1t"], preferred_element_type=jnp.float32)
          + prepared["b1"]).astype(jnp.bfloat16)
    r2 = (jnp.dot(r1, prepared["w2t"], preferred_element_type=jnp.float32)
          + prepared["b2"]).astype(jnp.bfloat16)
    ref_bf16 = (jnp.dot(r2, prepared["w3t"], preferred_element_type=jnp.float32)
                + prepared["b3"])[:, :out_features]
    assert jnp.allclose(out, ref_bf16, atol=1e-2, rtol=1e-2)

    # Full-f32 reference with PyTorch-convention weights (loose check — the
    # kernel intentionally uses bf16 matmul inputs).
    ref = x @ params["w1"].T + params["b1"]
    ref = ref @ params["w2"].T + params["b2"]
    ref = ref @ params["w3"].T + params["b3"]
    assert jnp.allclose(out, ref, atol=2e-1, rtol=5e-2)

    print("KERNEL_OK")
</pallas_src>

<mosaic_0001>
module attributes {stable_mosaic.version = 11 : i64} {
  func.func @decoder_kernel(%arg0: i32, %arg1: memref<64x32xbf16, #tpu.memory_space<vmem>>, %arg2: memref<32x128xbf16, #tpu.memory_space<vmem>>, %arg3: memref<1x128xf32, #tpu.memory_space<vmem>>, %arg4: memref<128x128xbf16, #tpu.memory_space<vmem>>, %arg5: memref<1x128xf32, #tpu.memory_space<vmem>>, %arg6: memref<128x128xbf16, #tpu.memory_space<vmem>>, %arg7: memref<1x128xf32, #tpu.memory_space<vmem>>, %arg8: memref<64x128xf32, #tpu.memory_space<vmem>>, %arg9: memref<64x128xbf16, #tpu.memory_space<vmem>>, %arg10: memref<64x128xbf16, #tpu.memory_space<vmem>>) attributes {dimension_semantics = [#tpu.dimension_semantics<parallel>], iteration_bounds = array<i64: 4>, scalar_prefetch = 0 : i64, scratch_operands = 2 : i64, tpu.core_type = #tpu.core_type<tc>, window_params = [{transform_indices = @transform_0, window_bounds = array<i64: 64, 32>}, {pipeline_mode = #tpu.pipeline_mode<synchronous>, transform_indices = @transform_1, window_bounds = array<i64: 32, 128>}, {pipeline_mode = #tpu.pipeline_mode<synchronous>, transform_indices = @transform_2, window_bounds = array<i64: 1, 128>}, {pipeline_mode = #tpu.pipeline_mode<synchronous>, transform_indices = @transform_3, window_bounds = array<i64: 128, 128>}, {pipeline_mode = #tpu.pipeline_mode<synchronous>, transform_indices = @transform_4, window_bounds = array<i64: 1, 128>}, {pipeline_mode = #tpu.pipeline_mode<synchronous>, transform_indices = @transform_5, window_bounds = array<i64: 128, 128>}, {pipeline_mode = #tpu.pipeline_mode<synchronous>, transform_indices = @transform_6, window_bounds = array<i64: 1, 128>}, {transform_indices = @transform_7, window_bounds = array<i64: 64, 128>}]} {
    %c0 = arith.constant 0 : index
    %c0_0 = arith.constant 0 : index
    %0 = vector.load %arg1[%c0, %c0_0] : memref<64x32xbf16, #tpu.memory_space<vmem>>, vector<64x32xbf16>
    %c0_1 = arith.constant 0 : index
    %c0_2 = arith.constant 0 : index
    %1 = vector.load %arg2[%c0_1, %c0_2] : memref<32x128xbf16, #tpu.memory_space<vmem>>, vector<32x128xbf16>
    %cst = arith.constant dense<0.000000e+00> : vector<64x128xf32>
    %2 = tpu.matmul %0, %1, %cst {dimension_numbers = #tpu.dot_dimension_numbers<[1], [0], [0], [1], [0, 0, 1, 1], [], []>} : vector<64x32xbf16>, vector<32x128xbf16>, vector<64x128xf32> -> vector<64x128xf32>
    %c0_3 = arith.constant 0 : index
    %c0_4 = arith.constant 0 : index
    %3 = vector.load %arg3[%c0_3, %c0_4] : memref<1x128xf32, #tpu.memory_space<vmem>>, vector<1x128xf32>
    %4 = vector.broadcast %3 : vector<1x128xf32> to vector<64x128xf32>
    %5 = arith.addf %2, %4 : vector<64x128xf32>
    %6 = arith.truncf %5 : vector<64x128xf32> to vector<64x128xbf16>
    %c0_5 = arith.constant 0 : index
    %c0_6 = arith.constant 0 : index
    %7 = vector.load %arg9[%c0_5, %c0_6] : memref<64x128xbf16, #tpu.memory_space<vmem>>, vector<64x128xbf16>
    tpu.vector_store %arg9[%c0_5, %c0_6], %6 {strides = array<i32>} : memref<64x128xbf16, #tpu.memory_space<vmem>>, vector<64x128xbf16>,
    %c0_7 = arith.constant 0 : index
    %c0_8 = arith.constant 0 : index
    %8 = vector.load %arg9[%c0_7, %c0_8] : memref<64x128xbf16, #tpu.memory_space<vmem>>, vector<64x128xbf16>
    %c0_9 = arith.constant 0 : index
    %c0_10 = arith.constant 0 : index
    %9 = vector.load %arg4[%c0_9, %c0_10] : memref<128x128xbf16, #tpu.memory_space<vmem>>, vector<128x128xbf16>
    %cst_11 = arith.constant dense<0.000000e+00> : vector<64x128xf32>
    %10 = tpu.matmul %8, %9, %cst_11 {dimension_numbers = #tpu.dot_dimension_numbers<[1], [0], [0], [1], [0, 0, 1, 1], [], []>} : vector<64x128xbf16>, vector<128x128xbf16>, vector<64x128xf32> -> vector<64x128xf32>
    %c0_12 = arith.constant 0 : index
    %c0_13 = arith.constant 0 : index
    %11 = vector.load %arg5[%c0_12, %c0_13] : memref<1x128xf32, #tpu.memory_space<vmem>>, vector<1x128xf32>
    %12 = vector.broadcast %11 : vector<1x128xf32> to vector<64x128xf32>
    %13 = arith.addf %10, %12 : vector<64x128xf32>
    %14 = arith.truncf %13 : vector<64x128xf32> to vector<64x128xbf16>
    %c0_14 = arith.constant 0 : index
    %c0_15 = arith.constant 0 : index
    %15 = vector.load %arg10[%c0_14, %c0_15] : memref<64x128xbf16, #tpu.memory_space<vmem>>, vector<64x128xbf16>
    tpu.vector_store %arg10[%c0_14, %c0_15], %14 {strides = array<i32>} : memref<64x128xbf16, #tpu.memory_space<vmem>>, vector<64x128xbf16>,
    %c0_16 = arith.constant 0 : index
    %c0_17 = arith.constant 0 : index
    %16 = vector.load %arg10[%c0_16, %c0_17] : memref<64x128xbf16, #tpu.memory_space<vmem>>, vector<64x128xbf16>
    %c0_18 = arith.constant 0 : index
    %c0_19 = arith.constant 0 : index
    %17 = vector.load %arg6[%c0_18, %c0_19] : memref<128x128xbf16, #tpu.memory_space<vmem>>, vector<128x128xbf16>
    %cst_20 = arith.constant dense<0.000000e+00> : vector<64x128xf32>
    %18 = tpu.matmul %16, %17, %cst_20 {dimension_numbers = #tpu.dot_dimension_numbers<[1], [0], [0], [1], [0, 0, 1, 1], [], []>} : vector<64x128xbf16>, vector<128x128xbf16>, vector<64x128xf32> -> vector<64x128xf32>
    %c0_21 = arith.constant 0 : index
    %c0_22 = arith.constant 0 : index
    %19 = vector.load %arg7[%c0_21, %c0_22] : memref<1x128xf32, #tpu.memory_space<vmem>>, vector<1x128xf32>
    %20 = vector.broadcast %19 : vector<1x128xf32> to vector<64x128xf32>
    %21 = arith.addf %18, %20 : vector<64x128xf32>
    %c0_23 = arith.constant 0 : index
    %c0_24 = arith.constant 0 : index
    %22 = vector.load %arg8[%c0_23, %c0_24] : memref<64x128xf32, #tpu.memory_space<vmem>>, vector<64x128xf32>
    tpu.vector_store %arg8[%c0_23, %c0_24], %21 {strides = array<i32>} : memref<64x128xf32, #tpu.memory_space<vmem>>, vector<64x128xf32>,
    return
  }
  func.func @transform_0(%arg0: i32) -> (i32, i32) {
    %c0_i32 = arith.constant 0 : i32
    %c0_i32_0 = arith.constant 0 : i32
    return %arg0, %c0_i32 : i32, i32
  }
  func.func @transform_1(%arg0: i32) -> (i32, i32) {
    %c0_i32 = arith.constant 0 : i32
    %c0_i32_0 = arith.constant 0 : i32
    %c0_i32_1 = arith.constant 0 : i32
    return %c0_i32, %c0_i32_0 : i32, i32
  }
  func.func @transform_2(%arg0: i32) -> (i32, i32) {
    %c0_i32 = arith.constant 0 : i32
    %c0_i32_0 = arith.constant 0 : i32
    %c0_i32_1 = arith.constant 0 : i32
    return %c0_i32, %c0_i32_0 : i32, i32
  }
  func.func @transform_3(%arg0: i32) -> (i32, i32) {
    %c0_i32 = arith.constant 0 : i32
    %c0_i32_0 = arith.constant 0 : i32
    %c0_i32_1 = arith.constant 0 : i32
    return %c0_i32, %c0_i32_0 : i32, i32
  }
  func.func @transform_4(%arg0: i32) -> (i32, i32) {
    %c0_i32 = arith.constant 0 : i32
    %c0_i32_0 = arith.constant 0 : i32
    %c0_i32_1 = arith.constant 0 : i32
    return %c0_i32, %c0_i32_0 : i32, i32
  }
  func.func @transform_5(%arg0: i32) -> (i32, i32) {
    %c0_i32 = arith.constant 0 : i32
    %c0_i32_0 = arith.constant 0 : i32
    %c0_i32_1 = arith.constant 0 : i32
    return %c0_i32, %c0_i32_0 : i32, i32
  }
  func.func @transform_6(%arg0: i32) -> (i32, i32) {
    %c0_i32 = arith.constant 0 : i32
    %c0_i32_0 = arith.constant 0 : i32
    %c0_i32_1 = arith.constant 0 : i32
    return %c0_i32, %c0_i32_0 : i32, i32
  }
  func.func @transform_7(%arg0: i32) -> (i32, i32) {
    %c0_i32 = arith.constant 0 : i32
    %c0_i32_0 = arith.constant 0 : i32
    return %arg0, %c0_i32 : i32, i32
  }
}

</mosaic_0001>

<llo_original>
// kernel: tpu_custom_call.1
$region0: #{tpu_custom_call.1}
  #allocation0 [shape = 'u32[]', space=smem, size = 0x4, offset = 0x4, fixed_abs, tag = 'smem constant byte address 0x4 - core index']
  #allocation1 [shape = 'u32[144,128]{1,0:T(1,128)}', space=vmem, size = 0x12000, scoped, tag = 'internal scratch']
  #allocation2 [shape = 'bf16[64,128]{1,0:T(16,128)(2,1)}', space=vmem, size = 0x4000, scoped, tag = 'scratch operand']
  #allocation3 [shape = 'bf16[64,128]{1,0:T(16,128)(2,1)}', space=vmem, size = 0x4000, scoped, tag = 'scratch operand']
  %s0 = inlined_call_operand.vmem [shape: bf16[256,32], index: 0, kind: input, shape index: {}]
  %s1 = inlined_call_operand.vmem [shape: bf16[32,128], index: 1, kind: input, shape index: {}]
  %s2 = inlined_call_operand.vmem [shape: f32[1,128], index: 2, kind: input, shape index: {}]
  %s3 = inlined_call_operand.vmem [shape: bf16[128,128], index: 3, kind: input, shape index: {}]
  %s4 = inlined_call_operand.vmem [shape: f32[1,128], index: 4, kind: input, shape index: {}]
  %s5 = inlined_call_operand.vmem [shape: bf16[128,128], index: 5, kind: input, shape index: {}]
  %s6 = inlined_call_operand.vmem [shape: f32[1,128], index: 6, kind: input, shape index: {}]
  %s7 = inlined_call_operand.hbm [shape: f32[256,128], index: 7, kind: output, shape index: {}]
  %s8 = sld [smem:[#allocation0]]
  $region61: #{tpu_custom_call.1} parent=0
    _
  %s10 = ssub.s32 1, %s8
  %s11 = scalar_select 0, %s10, %s8
  $region1: #{tpu_custom_call.1} parent=0
    #allocation4 [shape = 'u8[65536]{0}', space=vmem, size = 0x10000, scoped, tag = 'output window, operand 0']
    #allocation5 [shape = 's32[2]{0}', space=sflag, size = 0x8, scoped, tag = 'scoped memory for tpu_custom_call.1']
    %12 = vsyncpa [#allocation5], 0
    %s13 = scalar_lea.sflag [#allocation5], 1
    %14 = vsyncpa %s13, 0
    loop: start=0, step=1, limit=6
    $region2: #{tpu_custom_call.1} parent=1 // loop_pre_header
      _
    $region3: #{tpu_custom_call.1} parent=1 // loop_header
      %s16 = sphi 0, %s20
      %p17 = scmp.ge.s32.totalorder %s16, 6
      %s26 = sphi 0, %s28
      %s29 = sphi 0, %s26
      %s30 = sphi 0, %s29
      %s46 = sphi 0, %s30
      %s50 = sphi 0, %s50
      %s52 = sphi 0, %s50
      %s53 = sphi 0, %s52
      %s67 = sphi 0, %s53
      %s71 = sphi 0, %s71
      %s73 = sphi 0, %s71
      %s74 = sphi 0, %s73
      %s88 = sphi 0, %s74
      %s92 = sphi 0, %s92
      %s94 = sphi 0, %s92
      %s95 = sphi 0, %s94
      %s109 = sphi 0, %s95
      %s113 = sphi 0, %s113
      %s115 = sphi 0, %s113
      %s116 = sphi 0, %s115
      %s130 = sphi 0, %s116
      %s134 = sphi 0, %s134
      %s136 = sphi 0, %s134
      %s137 = sphi 0, %s136
      %s151 = sphi 0, %s137
      %s155 = sphi 0, %s155
      %s157 = sphi 0, %s155
      %s158 = sphi 0, %s157
      %s172 = sphi 0, %s158
      %s178 = sphi 0, %s180
      %s181 = sphi 0, %s178
      %s182 = sphi 0, %s181
      %s198 = sphi 0, %s182
    $region4: #{tpu_custom_call.1} parent=1 // loop_header_branch
      %19 = sbr.rel (%p17) target = $region8
    $region5: #{tpu_custom_call.1} parent=1 // loop_body
      %s21 = ssub.s32 %s16, 1
      %s22 = ssub.s32 %s16, 2
      %s23 = sadd.s32 %s16, 1
      %s24 = ssub.s32 %s16, %s23
      %p25 = scmp.eq.s32.totalorder %s24, 0
      %s27 = sadd.s32 %s26, 1
      %s28 = scalar_select %p25, %s26, %s27
      %p31 = pneg %p25
      %p32 = scmp.eq.s32.totalorder %s16, 3
      %p33 = por %p31, %p32
      %p34 = scmp.ne.s32.totalorder %s26, %s29
      %p35 = scmp.eq.s32.totalorder %s16, 0
      %p36 = por %p34, %p35
      %p37 = scmp.ne.s32.totalorder %s26, %s29
      %p38 = scmp.eq.s32.totalorder %s21, 3
      %p39 = por %p37, %p38
      %p40 = scmp.ne.s32.totalorder %s29, %s30
      %p41 = scmp.eq.s32.totalorder %s21, 0
      %p42 = por %p40, %p41
      %p43 = scmp.ne.s32.totalorder %s29, %s30
      %p44 = scmp.eq.s32.totalorder %s22, 3
      %p45 = por %p43, %p44
      %p47 = scmp.ne.s32.totalorder %s30, %s46
      %p48 = scmp.eq.s32.totalorder %s22, 0
      %p49 = por %p47, %p48
      %s51 = sadd.s32 %s50, 1
      %p54 = scmp.eq.s32.totalorder %s16, 3
      %p55 = scmp.ne.s32.totalorder %s50, %s52
      %p56 = scmp.eq.s32.totalorder %s16, 0
      %p57 = por %p55, %p56
      %p58 = scmp.ne.s32.totalorder %s50, %s52
      %p59 = scmp.eq.s32.totalorder %s21, 3
      %p60 = por %p58, %p59
      %p61 = scmp.ne.s32.totalorder %s52, %s53
      %p62 = scmp.eq.s32.totalorder %s21, 0
      %p63 = por %p61, %p62
      %p64 = scmp.ne.s32.totalorder %s52, %s53
      %p65 = scmp.eq.s32.totalorder %s22, 3
      %p66 = por %p64, %p65
      %p68 = scmp.ne.s32.totalorder %s53, %s67
      %p69 = scmp.eq.s32.totalorder %s22, 0
      %p70 = por %p68, %p69
      %s72 = sadd.s32 %s71, 1
      %p75 = scmp.eq.s32.totalorder %s16, 3
      %p76 = scmp.ne.s32.totalorder %s71, %s73
      %p77 = scmp.eq.s32.totalorder %s16, 0
      %p78 = por %p76, %p77
      %p79 = scmp.ne.s32.totalorder %s71, %s73
      %p80 = scmp.eq.s32.totalorder %s21, 3
      %p81 = por %p79, %p80
      %p82 = scmp.ne.s32.totalorder %s73, %s74
      %p83 = scmp.eq.s32.totalorder %s21, 0
      %p84 = por %p82, %p83
      %p85 = scmp.ne.s32.totalorder %s73, %s74
      %p86 = scmp.eq.s32.totalorder %s22, 3
      %p87 = por %p85, %p86
      %p89 = scmp.ne.s32.totalorder %s74, %s88
      %p90 = scmp.eq.s32.totalorder %s22, 0
      %p91 = por %p89, %p90
      %s93 = sadd.s32 %s92, 1
      %p96 = scmp.eq.s32.totalorder %s16, 3
      %p97 = scmp.ne.s32.totalorder %s92, %s94
      %p98 = scmp.eq.s32.totalorder %s16, 0
      %p99 = por %p97, %p98
      %p100 = scmp.ne.s32.totalorder %s92, %s94
      %p101 = scmp.eq.s32.totalorder %s21, 3
      %p102 = por %p100, %p101
      %p103 = scmp.ne.s32.totalorder %s94, %s95
      %p104 = scmp.eq.s32.totalorder %s21, 0
      %p105 = por %p103, %p104
      %p106 = scmp.ne.s32.totalorder %s94, %s95
      %p107 = scmp.eq.s32.totalorder %s22, 3
      %p108 = por %p106, %p107
      %p110 = scmp.ne.s32.totalorder %s95, %s109
      %p111 = scmp.eq.s32.totalorder %s22, 0
      %p112 = por %p110, %p111
      %s114 = sadd.s32 %s113, 1
      %p117 = scmp.eq.s32.totalorder %s16, 3
      %p118 = scmp.ne.s32.totalorder %s113, %s115
      %p119 = scmp.eq.s32.totalorder %s16, 0
      %p120 = por %p118, %p119
      %p121 = scmp.ne.s32.totalorder %s113, %s115
      %p122 = scmp.eq.s32.totalorder %s21, 3
      %p123 = por %p121, %p122
      %p124 = scmp.ne.s32.totalorder %s115, %s116
      %p125 = scmp.eq.s32.totalorder %s21, 0
      %p126 = por %p124, %p125
      %p127 = scmp.ne.s32.totalorder %s115, %s116
      %p128 = scmp.eq.s32.totalorder %s22, 3
      %p129 = por %p127, %p128
      %p131 = scmp.ne.s32.totalorder %s116, %s130
      %p132 = scmp.eq.s32.totalorder %s22, 0
      %p133 = por %p131, %p132
      %s135 = sadd.s32 %s134, 1
      %p138 = scmp.eq.s32.totalorder %s16, 3
      %p139 = scmp.ne.s32.totalorder %s134, %s136
      %p140 = scmp.eq.s32.totalorder %s16, 0
      %p141 = por %p139, %p140
      %p142 = scmp.ne.s32.totalorder %s134, %s136
      %p143 = scmp.eq.s32.totalorder %s21, 3
      %p144 = por %p142, %p143
      %p145 = scmp.ne.s32.totalorder %s136, %s137
      %p146 = scmp.eq.s32.totalorder %s21, 0
      %p147 = por %p145, %p146
      %p148 = scmp.ne.s32.totalorder %s136, %s137
      %p149 = scmp.eq.s32.totalorder %s22, 3
      %p150 = por %p148, %p149
      %p152 = scmp.ne.s32.totalorder %s137, %s151
      %p153 = scmp.eq.s32.totalorder %s22, 0
      %p154 = por %p152, %p153
      %s156 = sadd.s32 %s155, 1
      %p159 = scmp.eq.s32.totalorder %s16, 3
      %p160 = scmp.ne.s32.totalorder %s155, %s157
      %p161 = scmp.eq.s32.totalorder %s16, 0
      %p162 = por %p160, %p161
      %p163 = scmp.ne.s32.totalorder %s155, %s157
      %p164 = scmp.eq.s32.totalorder %s21, 3
      %p165 = por %p163, %p164
      %p166 = scmp.ne.s32.totalorder %s157, %s158
      %p167 = scmp.eq.s32.totalorder %s21, 0
      %p168 = por %p166, %p167
      %p169 = scmp.ne.s32.totalorder %s157, %s158
      %p170 = scmp.eq.s32.totalorder %s22, 3
      %p171 = por %p169, %p170
      %p173 = scmp.ne.s32.totalorder %s158, %s172
      %p174 = scmp.eq.s32.totalorder %s22, 0
      %p175 = por %p173, %p174
      %s176 = ssub.s32 %s16, %s23
      %p177 = scmp.eq.s32.totalorder %s176, 0
      %s179 = sadd.s32 %s178, 1
      %s180 = scalar_select %p177, %s178, %s179
      %p183 = pneg %p177
      %p184 = scmp.eq.s32.totalorder %s16, 3
      %p185 = por %p183, %p184
      %p186 = scmp.ne.s32.totalorder %s178, %s181
      %p187 = scmp.eq.s32.totalorder %s16, 0
      %p188 = por %p186, %p187
      %p189 = scmp.ne.s32.totalorder %s178, %s181
      %p190 = scmp.eq.s32.totalorder %s21, 3
      %p191 = por %p189, %p190
      %p192 = scmp.ne.s32.totalorder %s181, %s182
      %p193 = scmp.eq.s32.totalorder %s21, 0
      %p194 = por %p192, %p193
      %p195 = scmp.ne.s32.totalorder %s181, %s182
      %p196 = scmp.eq.s32.totalorder %s22, 3
      %p197 = por %p195, %p196
      %p199 = scmp.ne.s32.totalorder %s182, %s198
      %p200 = scmp.eq.s32.totalorder %s22, 0
      %p201 = por %p199, %p200
      %p202 = scmp.le.s32.totalorder 1, %s16
      %p203 = scmp.lt.s32.totalorder %s16, 5
      %p204 = pnand %p202, %p203
      %p205 = pneg %p204
      // Predicated region
      $region9: #{tpu_custom_call.1} parent=5 // pred_check
        _
      $region10: #{tpu_custom_call.1} parent=5 // pred_check_branch
        %207 = sbr.rel (%p204) target = $region12
      $region11: #{tpu_custom_call.1} parent=5 // pred_region
        %s208 = ssub.s32 %s16, 1
        // Predicated region
        $region13: #{tpu_custom_call.1} parent=11 // pred_check
          %p209 = pneg %p63
        $region14: #{tpu_custom_call.1} parent=11 // pred_check_branch
          %211 = sbr.rel (%p209) target = $region16
        $region15: #{tpu_custom_call.1} parent=11 // pred_region
          _
        $region16: #{tpu_custom_call.1} parent=11 // pred_fallthru
          _
        // Predicated region
        $region17: #{tpu_custom_call.1} parent=11 // pred_check
          %p212 = pneg %p84
        $region18: #{tpu_custom_call.1} parent=11 // pred_check_branch
          %214 = sbr.rel (%p212) target = $region20
        $region19: #{tpu_custom_call.1} parent=11 // pred_region
          _
        $region20: #{tpu_custom_call.1} parent=11 // pred_fallthru
          _
        // Predicated region
        $region21: #{tpu_custom_call.1} parent=11 // pred_check
          %p215 = pneg %p105
        $region22: #{tpu_custom_call.1} parent=11 // pred_check_branch
          %217 = sbr.rel (%p215) target = $region24
        $region23: #{tpu_custom_call.1} parent=11 // pred_region
          _
        $region24: #{tpu_custom_call.1} parent=11 // pred_fallthru
          _
        // Predicated region
        $region25: #{tpu_custom_call.1} parent=11 // pred_check
          %p218 = pneg %p126
        $region26: #{tpu_custom_call.1} parent=11 // pred_check_branch
          %220 = sbr.rel (%p218) target = $region28
        $region27: #{tpu_custom_call.1} parent=11 // pred_region
          _
        $region28: #{tpu_custom_call.1} parent=11 // pred_fallthru
          _
        // Predicated region
        $region29: #{tpu_custom_call.1} parent=11 // pred_check
          %p221 = pneg %p147
        $region30: #{tpu_custom_call.1} parent=11 // pred_check_branch
          %223 = sbr.rel (%p221) target = $region32
        $region31: #{tpu_custom_call.1} parent=11 // pred_region
          _
        $region32: #{tpu_custom_call.1} parent=11 // pred_fallthru
          _
        // Predicated region
        $region33: #{tpu_custom_call.1} parent=11 // pred_check
          %p224 = pneg %p168
        $region34: #{tpu_custom_call.1} parent=11 // pred_check_branch
          %226 = sbr.rel (%p224) target = $region36
        $region35: #{tpu_custom_call.1} parent=11 // pred_region
          _
        $region36: #{tpu_custom_call.1} parent=11 // pred_fallthru
          _
      $region12: #{tpu_custom_call.1} parent=5 // pred_fallthru
        _
      %p227 = scmp.lt.s32.totalorder %s16, 4
      // Predicated region
      $region37: #{tpu_custom_call.1} parent=5 // pred_check
        %p228 = pneg %p227
      $region38: #{tpu_custom_call.1} parent=5 // pred_check_branch
        %230 = sbr.rel (%p228) target = $region40
      $region39: #{tpu_custom_call.1} parent=5 // pred_region
        // Predicated region
        $region41: #{tpu_custom_call.1} parent=39 // pred_check
          %p231 = pneg %p36
        $region42: #{tpu_custom_call.1} parent=39 // pred_check_branch
          %233 = sbr.rel (%p231) target = $region44
        $region43: #{tpu_custom_call.1} parent=39 // pred_region
          %s234 = smul.u32 8, %s16
          %p235 = scmp.lt.s32.totalorder %s234, 31
          %s236 = scalar_select %p235, %s234, 31
          %s237 = smul.addr %s236, 4
          %s238 = scalar_lea.vmem %s0, %s237
          %s239 = smul.u32 8, %s16
        $region44: #{tpu_custom_call.1} parent=39 // pred_fallthru
          _
      $region40: #{tpu_custom_call.1} parent=5 // pred_fallthru
        _
      %p240 = scmp.le.s32.totalorder 1, %s16
      %p241 = scmp.lt.s32.totalorder %s16, 5
      %p242 = pnand %p240, %p241
      %p243 = pneg %p242
      // Predicated region
      $region45: #{tpu_custom_call.1} parent=5 // pred_check
        _
      $region46: #{tpu_custom_call.1} parent=5 // pred_check_branch
        %245 = sbr.rel (%p242) target = $region48
      $region47: #{tpu_custom_call.1} parent=5 // pred_region
        %s246 = ssub.s32 %s16, 1
        %s247 = smul.u32 8, %s21
        %p248 = scmp.lt.s32.totalorder %s247, 31
        %s249 = scalar_select %p248, %s247, 31
        %s250 = smul.addr %s249, 4
        %s251 = scalar_lea.vmem %s0, %s250
        %p252 = pneg %p42
        %p253 = pneg %p39
        %p254 = pneg %p63
        %p255 = pneg %p60
        %p256 = pneg %p84
        %p257 = pneg %p81
        %p258 = pneg %p105
        %p259 = pneg %p102
        %p260 = pneg %p126
        %p261 = pneg %p123
        %p262 = pneg %p147
        %p263 = pneg %p144
        %p264 = pneg %p168
        %p265 = pneg %p165
        %p266 = pneg %p194
        %p267 = pneg %p191
        %s268 = sand.u32 %s181, 1
        %s269 = scalar_lea.sflag [#allocation5], %s268
        %s270 = sand.u32 %s181, 1
        %s271 = smul.addr %s270, 64
        %s272 = scalar_lea.vmem [#allocation4], %s271
        %s273 = smul.u32 8, %s21
        %p274 = scmp.lt.s32.totalorder %s273, 31
        %s275 = scalar_select %p274, %s273, 31
        %s276 = smul.addr %s275, 4
        %s277 = scalar_lea.vmem %s0, %s276
        %s278 = smul.u32 8, %s21
        %s279 = smul.u32 8, %s21
        %v281 = vld [vmem:[%s277] sm:$0xf]
        %v282 = vld [vmem:[%s277 + $0x4] sm:$0xf]
        %v283 = vld [vmem:[%s277 + $0x8] sm:$0xf]
        %v284 = vld [vmem:[%s277 + $0xc] sm:$0xf]
        %v285 = vld [vmem:[%s277 + $0x10] sm:$0xf]
        %v286 = vld [vmem:[%s277 + $0x14] sm:$0xf]
        %v287 = vld [vmem:[%s277 + $0x18] sm:$0xf]
        %v288 = vld [vmem:[%s277 + $0x1c] sm:$0xf]
        %v289 = vld [vmem:[%s1] sm:$0xf]
        %v290 = vld [vmem:[%s1 + $0x4] sm:$0xf]
        %v291 = vld [vmem:[%s1 + $0x8] sm:$0xf]
        %v292 = vld [vmem:[%s1 + $0xc] sm:$0xf]
        %v293 = vld [vmem:[%s2] sm:$0x1]
        %v295 = vlaneseq
        %v296 = vshrl.u32 %v295, 7
        %v297 = vsub.s32 0, %v296
        %v298 = vrot.slane %v293, %v297
        %v308 = vunpack.c.l.b16 %v281
        %v309 = vunpack.c.l.b16 %v282
        %v310 = vunpack.c.l.b16 %v283
        %v311 = vunpack.c.l.b16 %v284
        %v312 = vunpack.c.l.b16 %v285
        %v313 = vunpack.c.l.b16 %v286
        %v314 = vunpack.c.l.b16 %v287
        %v315 = vunpack.c.l.b16 %v288
        %v316 = vpack.c.b16 %v309, %v308
        %v317 = vpack.c.b16 %v311, %v310
        %v318 = vpack.c.b16 %v313, %v312
        %v319 = vpack.c.b16 %v315, %v314
        %v324 = vunpack.c.l.b16 %v289
        %v325 = vunpack.c.l.b16 %v290
        %v326 = vunpack.c.l.b16 %v291
        %v327 = vunpack.c.l.b16 %v292
        %v328 = vpack.c.b16 %v325, %v324
        %v329 = vpack.c.b16 %v327, %v326
        %vm332 = vcmask 261120
        %v334 = vsel %vm332, %v316, 0
        %v337 = vsel %vm332, %v317, 0
        %v340 = vsel %vm332, %v318, 0
        %v343 = vsel %vm332, %v319, 0
        %345 = vmatprep.subr.bf16.mxu0 0
        %346 = vmatpush1.bf16.msra.mxu0 %v328
        %347 = vmatprep.subr.bf16.mxu0 0
        %348 = vmatpush1.bf16.msra.mxu0 %v329
        %349 = vmatprep.subr.bf16.mxu0 0
        %350 = vmatpush1.bf16.msra.mxu0 0
        %351 = vmatprep.subr.bf16.mxu0 0
        %352 = vmatpush1.bf16.msra.mxu0 0
        %353 = vmatprep.subr.bf16.mxu0 0
        %354 = vmatpush1.bf16.msra.mxu0 0
        %355 = vmatprep.subr.bf16.mxu0 0
        %356 = vmatpush1.bf16.msra.mxu0 0
        %357 = vmatprep.subr.bf16.mxu0 0
        %358 = vmatpush1.bf16.msra.mxu0 0
        %359 = vmatprep.subr.bf16.mxu0 0
        %360 = vmatpush1.bf16.msra.mxu0 0
        %361 = vmatprep.subr.bf16.mxu0 0
        %362 = vmatpush1.bf16.msra.mxu0 0
        %363 = vmatprep.subr.bf16.mxu0 0
        %364 = vmatpush1.bf16.msra.mxu0 0
        %365 = vmatprep.subr.bf16.mxu0 0
        %366 = vmatpush1.bf16.msra.mxu0 0
        %367 = vmatprep.subr.bf16.mxu0 0
        %368 = vmatpush1.bf16.msra.mxu0 0
        %369 = vmatprep.subr.bf16.mxu0 0
        %370 = vmatpush1.bf16.msra.mxu0 0
        %371 = vmatprep.subr.bf16.mxu0 0
        %372 = vmatpush1.bf16.msra.mxu0 0
        %373 = vmatprep.subr.bf16.mxu0 0
        %374 = vmatpush1.bf16.msra.mxu0 0
        %375 = vmatprep.subr.bf16.mxu0 0
        %376 = vmatpush1.bf16.msra.mxu0 0
        %377 = vmatprep.mubr.bf16.mxu0 0
        %378 = vmatmul.mubr.bf16.gmra.mrb[0].mxu0 %v334
        %v379 = vpop.f32.mrb[0].mxu0
        %v380 = vadd.f32 %v298, %v379
        %v381 = vpop.f32.mrb[0].mxu0
        %v382 = vpop.f32.mrb[0].mxu0
        %v383 = vadd.f32 %v298, %v382
        %v384 = vpop.f32.mrb[0].mxu0
        %385 = vmatprep.mubr.bf16.mxu0 0
        %386 = vmatmul.mubr.bf16.gmra.mrb[0].mxu0 %v337
        %v387 = vpop.f32.mrb[0].mxu0
        %v388 = vadd.f32 %v298, %v387
        %v389 = vpop.f32.mrb[0].mxu0
        %v390 = vpop.f32.mrb[0].mxu0
        %v391 = vadd.f32 %v298, %v390
        %v392 = vpop.f32.mrb[0].mxu0
        %393 = vmatprep.mubr.bf16.mxu0 0
        %394 = vmatmul.mubr.bf16.gmra.mrb[0].mxu0 %v340
        %v395 = vpop.f32.mrb[0].mxu0
        %v396 = vadd.f32 %v298, %v395
        %v397 = vpop.f32.mrb[0].mxu0
        %v398 = vpop.f32.mrb[0].mxu0
        %v399 = vadd.f32 %v298, %v398
        %v400 = vpop.f32.mrb[0].mxu0
        %401 = vmatprep.mubr.bf16.mxu0 0
        %402 = vmatmul.mubr.bf16.gmra.mrb[0].mxu0 %v343
        %v403 = vpop.f32.mrb[0].mxu0
        %v404 = vadd.f32 %v298, %v403
        %v405 = vpop.f32.mrb[0].mxu0
        %v406 = vpop.f32.mrb[0].mxu0
        %v407 = vadd.f32 %v298, %v406
        %v408 = vpop.f32.mrb[0].mxu0
        %409 = vdwg.mxu0
        %v410 = vpack.c.bf16 %v383, %v380
        %v411 = vpack.c.bf16 %v391, %v388
        %v412 = vpack.c.bf16 %v399, %v396
        %v413 = vpack.c.bf16 %v407, %v404
        %414 = vst [vmem:[#allocation2] sm:$0xff] %v410
        %415 = vst [vmem:[#allocation2 + $0x8] sm:$0xff] %v411
        %416 = vst [vmem:[#allocation2 + $0x10] sm:$0xff] %v412
        %417 = vst [vmem:[#allocation2 + $0x18] sm:$0xff] %v413
        %v418 = vld [vmem:[#allocation2] sm:$0xff]
        %v419 = vld [vmem:[#allocation2 + $0x8] sm:$0xff]
        %v420 = vld [vmem:[#allocation2 + $0x10] sm:$0xff]
        %v421 = vld [vmem:[#allocation2 + $0x18] sm:$0xff]
        %v422 = vld [vmem:[%s3] sm:$0xf]
        %v423 = vld [vmem:[%s3 + $0x4] sm:$0xf]
        %v424 = vld [vmem:[%s3 + $0x8] sm:$0xf]
        %v425 = vld [vmem:[%s3 + $0xc] sm:$0xf]
        %v426 = vld [vmem:[%s3 + $0x10] sm:$0xf]
        %v427 = vld [vmem:[%s3 + $0x14] sm:$0xf]
        %v428 = vld [vmem:[%s3 + $0x18] sm:$0xf]
        %v429 = vld [vmem:[%s3 + $0x1c] sm:$0xf]
        %v430 = vld [vmem:[%s3 + $0x20] sm:$0xf]
        %v431 = vld [vmem:[%s3 + $0x24] sm:$0xf]
        %v432 = vld [vmem:[%s3 + $0x28] sm:$0xf]
        %v433 = vld [vmem:[%s3 + $0x2c] sm:$0xf]
        %v434 = vld [vmem:[%s3 + $0x30] sm:$0xf]
        %v435 = vld [vmem:[%s3 + $0x34] sm:$0xf]
        %v436 = vld [vmem:[%s3 + $0x38] sm:$0xf]
        %v437 = vld [vmem:[%s3 + $0x3c] sm:$0xf]
        %v438 = vld [vmem:[%s4] sm:$0x1]
        %v440 = vlaneseq
        %v441 = vshrl.u32 %v440, 7
        %v442 = vsub.s32 0, %v441
        %v443 = vrot.slane %v438, %v442
        %v461 = vunpack.c.l.b16 %v422
        %v462 = vunpack.c.l.b16 %v423
        %v463 = vunpack.c.l.b16 %v424
        %v464 = vunpack.c.l.b16 %v425
        %v465 = vunpack.c.l.b16 %v426
        %v466 = vunpack.c.l.b16 %v427
        %v467 = vunpack.c.l.b16 %v428
        %v468 = vunpack.c.l.b16 %v429
        %v469 = vunpack.c.l.b16 %v430
        %v470 = vunpack.c.l.b16 %v431
        %v471 = vunpack.c.l.b16 %v432
        %v472 = vunpack.c.l.b16 %v433
        %v473 = vunpack.c.l.b16 %v434
        %v474 = vunpack.c.l.b16 %v435
        %v475 = vunpack.c.l.b16 %v436
        %v476 = vunpack.c.l.b16 %v437
        %v477 = vpack.c.b16 %v462, %v461
        %v478 = vpack.c.b16 %v464, %v463
        %v479 = vpack.c.b16 %v466, %v465
        %v480 = vpack.c.b16 %v468, %v467
        %v481 = vpack.c.b16 %v470, %v469
        %v482 = vpack.c.b16 %v472, %v471
        %v483 = vpack.c.b16 %v474, %v473
        %v484 = vpack.c.b16 %v476, %v475
        %493 = vmatprep.subr.bf16.mxu0 0
        %494 = vmatpush1.bf16.msra.mxu0 %v477
        %495 = vmatprep.subr.bf16.mxu0 0
        %496 = vmatpush1.bf16.msra.mxu0 %v478
        %497 = vmatprep.subr.bf16.mxu0 0
        %498 = vmatpush1.bf16.msra.mxu0 %v479
        %499 = vmatprep.subr.bf16.mxu0 0
        %500 = vmatpush1.bf16.msra.mxu0 %v480
        %501 = vmatprep.subr.bf16.mxu0 0
        %502 = vmatpush1.bf16.msra.mxu0 %v481
        %503 = vmatprep.subr.bf16.mxu0 0
        %504 = vmatpush1.bf16.msra.mxu0 %v482
        %505 = vmatprep.subr.bf16.mxu0 0
        %506 = vmatpush1.bf16.msra.mxu0 %v483
        %507 = vmatprep.subr.bf16.mxu0 0
        %508 = vmatpush1.bf16.msra.mxu0 %v484
        %509 = vmatprep.subr.bf16.mxu0 0
        %510 = vmatpush1.bf16.msra.mxu0 0
        %511 = vmatprep.subr.bf16.mxu0 0
        %512 = vmatpush1.bf16.msra.mxu0 0
        %513 = vmatprep.subr.bf16.mxu0 0
        %514 = vmatpush1.bf16.msra.mxu0 0
        %515 = vmatprep.subr.bf16.mxu0 0
        %516 = vmatpush1.bf16.msra.mxu0 0
        %517 = vmatprep.subr.bf16.mxu0 0
        %518 = vmatpush1.bf16.msra.mxu0 0
        %519 = vmatprep.subr.bf16.mxu0 0
        %520 = vmatpush1.bf16.msra.mxu0 0
        %521 = vmatprep.subr.bf16.mxu0 0
        %522 = vmatpush1.bf16.msra.mxu0 0
        %523 = vmatprep.subr.bf16.mxu0 0
        %524 = vmatpush1.bf16.msra.mxu0 0
        %525 = vmatprep.mubr.bf16.mxu0 0
        %526 = vmatmul.mubr.bf16.gmra.mrb[0].mxu0 %v418
        %v527 = vpop.f32.mrb[0].mxu0
        %v528 = vadd.f32 %v443, %v527
        %v529 = vpop.f32.mrb[0].mxu0
        %v530 = vpop.f32.mrb[0].mxu0
        %v531 = vadd.f32 %v443, %v530
        %v532 = vpop.f32.mrb[0].mxu0
        %533 = vmatprep.mubr.bf16.mxu0 0
        %534 = vmatmul.mubr.bf16.gmra.mrb[0].mxu0 %v419
        %v535 = vpop.f32.mrb[0].mxu0
        %v536 = vadd.f32 %v443, %v535
        %v537 = vpop.f32.mrb[0].mxu0
        %v538 = vpop.f32.mrb[0].mxu0
        %v539 = vadd.f32 %v443, %v538
        %v540 = vpop.f32.mrb[0].mxu0
        %541 = vmatprep.mubr.bf16.mxu0 0
        %542 = vmatmul.mubr.bf16.gmra.mrb[0].mxu0 %v420
        %v543 = vpop.f32.mrb[0].mxu0
        %v544 = vadd.f32 %v443, %v543
        %v545 = vpop.f32.mrb[0].mxu0
        %v546 = vpop.f32.mrb[0].mxu0
        %v547 = vadd.f32 %v443, %v546
        %v548 = vpop.f32.mrb[0].mxu0
        %549 = vmatprep.mubr.bf16.mxu0 0
        %550 = vmatmul.mubr.bf16.gmra.mrb[0].mxu0 %v421
        %v551 = vpop.f32.mrb[0].mxu0
        %v552 = vadd.f32 %v443, %v551
        %v553 = vpop.f32.mrb[0].mxu0
        %v554 = vpop.f32.mrb[0].mxu0
        %v555 = vadd.f32 %v443, %v554
        %v556 = vpop.f32.mrb[0].mxu0
        %557 = vdwg.mxu0
        %v558 = vpack.c.bf16 %v531, %v528
        %v559 = vpack.c.bf16 %v539, %v536
        %v560 = vpack.c.bf16 %v547, %v544
        %v561 = vpack.c.bf16 %v555, %v552
        %562 = vst [vmem:[#allocation3] sm:$0xff] %v558
        %563 = vst [vmem:[#allocation3 + $0x8] sm:$0xff] %v559
        %564 = vst [vmem:[#allocation3 + $0x10] sm:$0xff] %v560
        %565 = vst [vmem:[#allocation3 + $0x18] sm:$0xff] %v561
        %v566 = vld [vmem:[#allocation3] sm:$0xff]
        %v567 = vld [vmem:[#allocation3 + $0x8] sm:$0xff]
        %v568 = vld [vmem:[#allocation3 + $0x10] sm:$0xff]
        %v569 = vld [vmem:[#allocation3 + $0x18] sm:$0xff]
        %v570 = vld [vmem:[%s5] sm:$0xf]
        %v571 = vld [vmem:[%s5 + $0x4] sm:$0xf]
        %v572 = vld [vmem:[%s5 + $0x8] sm:$0xf]
        %v573 = vld [vmem:[%s5 + $0xc] sm:$0xf]
        %v574 = vld [vmem:[%s5 + $0x10] sm:$0xf]
        %v575 = vld [vmem:[%s5 + $0x14] sm:$0xf]
        %v576 = vld [vmem:[%s5 + $0x18] sm:$0xf]
        %v577 = vld [vmem:[%s5 + $0x1c] sm:$0xf]
        %v578 = vld [vmem:[%s5 + $0x20] sm:$0xf]
        %v579 = vld [vmem:[%s5 + $0x24] sm:$0xf]
        %v580 = vld [vmem:[%s5 + $0x28] sm:$0xf]
        %v581 = vld [vmem:[%s5 + $0x2c] sm:$0xf]
        %v582 = vld [vmem:[%s5 + $0x30] sm:$0xf]
        %v583 = vld [vmem:[%s5 + $0x34] sm:$0xf]
        %v584 = vld [vmem:[%s5 + $0x38] sm:$0xf]
        %v585 = vld [vmem:[%s5 + $0x3c] sm:$0xf]
        %v586 = vld [vmem:[%s6] sm:$0x1]
        %v588 = vlaneseq
        %v589 = vshrl.u32 %v588, 7
        %v590 = vsub.s32 0, %v589
        %v591 = vrot.slane %v586, %v590
        %v609 = vunpack.c.l.b16 %v570
        %v610 = vunpack.c.l.b16 %v571
        %v611 = vunpack.c.l.b16 %v572
        %v612 = vunpack.c.l.b16 %v573
        %v613 = vunpack.c.l.b16 %v574
        %v614 = vunpack.c.l.b16 %v575
        %v615 = vunpack.c.l.b16 %v576
        %v616 = vunpack.c.l.b16 %v577
        %v617 = vunpack.c.l.b16 %v578
        %v618 = vunpack.c.l.b16 %v579
        %v619 = vunpack.c.l.b16 %v580
        %v620 = vunpack.c.l.b16 %v581
        %v621 = vunpack.c.l.b16 %v582
        %v622 = vunpack.c.l.b16 %v583
        %v623 = vunpack.c.l.b16 %v584
        %v624 = vunpack.c.l.b16 %v585
        %v625 = vpack.c.b16 %v610, %v609
        %v626 = vpack.c.b16 %v612, %v611
        %v627 = vpack.c.b16 %v614, %v613
        %v628 = vpack.c.b16 %v616, %v615
        %v629 = vpack.c.b16 %v618, %v617
        %v630 = vpack.c.b16 %v620, %v619
        %v631 = vpack.c.b16 %v622, %v621
        %v632 = vpack.c.b16 %v624, %v623
        %641 = vmatprep.subr.bf16.mxu0 0
        %642 = vmatpush1.bf16.msra.mxu0 %v625
        %643 = vmatprep.subr.bf16.mxu0 0
        %644 = vmatpush1.bf16.msra.mxu0 %v626
        %645 = vmatprep.subr.bf16.mxu0 0
        %646 = vmatpush1.bf16.msra.mxu0 %v627
        %647 = vmatprep.subr.bf16.mxu0 0
        %648 = vmatpush1.bf16.msra.mxu0 %v628
        %649 = vmatprep.subr.bf16.mxu0 0
        %650 = vmatpush1.bf16.msra.mxu0 %v629
        %651 = vmatprep.subr.bf16.mxu0 0
        %652 = vmatpush1.bf16.msra.mxu0 %v630
        %653 = vmatprep.subr.bf16.mxu0 0
        %654 = vmatpush1.bf16.msra.mxu0 %v631
        %655 = vmatprep.subr.bf16.mxu0 0
        %656 = vmatpush1.bf16.msra.mxu0 %v632
        %657 = vmatprep.subr.bf16.mxu0 0
        %658 = vmatpush1.bf16.msra.mxu0 0
        %659 = vmatprep.subr.bf16.mxu0 0
        %660 = vmatpush1.bf16.msra.mxu0 0
        %661 = vmatprep.subr.bf16.mxu0 0
        %662 = vmatpush1.bf16.msra.mxu0 0
        %663 = vmatprep.subr.bf16.mxu0 0
        %664 = vmatpush1.bf16.msra.mxu0 0
        %665 = vmatprep.subr.bf16.mxu0 0
        %666 = vmatpush1.bf16.msra.mxu0 0
        %667 = vmatprep.subr.bf16.mxu0 0
        %668 = vmatpush1.bf16.msra.mxu0 0
        %669 = vmatprep.subr.bf16.mxu0 0
        %670 = vmatpush1.bf16.msra.mxu0 0
        %671 = vmatprep.subr.bf16.mxu0 0
        %672 = vmatpush1.bf16.msra.mxu0 0
        %673 = vmatprep.mubr.bf16.mxu0 0
        %674 = vmatmul.mubr.bf16.gmra.mrb[0].mxu0 %v566
        %v675 = vpop.f32.mrb[0].mxu0
        %v676 = vadd.f32 %v591, %v675
        %v677 = vpop.f32.mrb[0].mxu0
        %v678 = vpop.f32.mrb[0].mxu0
        %v679 = vadd.f32 %v591, %v678
        %v680 = vpop.f32.mrb[0].mxu0
        %681 = vmatprep.mubr.bf16.mxu0 0
        %682 = vmatmul.mubr.bf16.gmra.mrb[0].mxu0 %v567
        %v683 = vpop.f32.mrb[0].mxu0
        %v684 = vadd.f32 %v591, %v683
        %v685 = vpop.f32.mrb[0].mxu0
        %v686 = vpop.f32.mrb[0].mxu0
        %v687 = vadd.f32 %v591, %v686
        %v688 = vpop.f32.mrb[0].mxu0
        %689 = vmatprep.mubr.bf16.mxu0 0
        %690 = vmatmul.mubr.bf16.gmra.mrb[0].mxu0 %v568
        %v691 = vpop.f32.mrb[0].mxu0
        %v692 = vadd.f32 %v591, %v691
        %v693 = vpop.f32.mrb[0].mxu0
        %v694 = vpop.f32.mrb[0].mxu0
        %v695 = vadd.f32 %v591, %v694
        %v696 = vpop.f32.mrb[0].mxu0
        %697 = vmatprep.mubr.bf16.mxu0 0
        %698 = vmatmul.mubr.bf16.gmra.mrb[0].mxu0 %v569
        %v699 = vpop.f32.mrb[0].mxu0
        %v700 = vadd.f32 %v591, %v699
        %v701 = vpop.f32.mrb[0].mxu0
        %v702 = vpop.f32.mrb[0].mxu0
        %v703 = vadd.f32 %v591, %v702
        %v704 = vpop.f32.mrb[0].mxu0
        %705 = vdwg.mxu0
        %706 = vst [vmem:[%s272] sm:$0xff] %v676
        %707 = vst [vmem:[%s272 + $0x8] sm:$0xff] %v679
        %708 = vst [vmem:[%s272 + $0x10] sm:$0xff] %v684
        %709 = vst [vmem:[%s272 + $0x18] sm:$0xff] %v687
        %710 = vst [vmem:[%s272 + $0x20] sm:$0xff] %v692
        %711 = vst [vmem:[%s272 + $0x28] sm:$0xff] %v695
        %712 = vst [vmem:[%s272 + $0x30] sm:$0xff] %v700
        %713 = vst [vmem:[%s272 + $0x38] sm:$0xff] %v703
        %s714 = sand.u32 %s181, 1
        %s715 = scalar_lea.sflag [#allocation5], %s714
        %s716 = sand.u32 %s181, 1
        %s717 = smul.addr %s716, 64
        %s718 = scalar_lea.vmem [#allocation4], %s717
        // Predicated region
        $region49: #{tpu_custom_call.1} parent=47 // pred_check
          %p719 = pneg %p191
        $region50: #{tpu_custom_call.1} parent=47 // pred_check_branch
          %721 = sbr.rel (%p719) target = $region52
        $region51: #{tpu_custom_call.1} parent=47 // pred_region
          %s722 = smul.u32 8, %s21
          %s724 = ssub.s32 1024, 1024
          %725 = vsyncadd %s715, %s724
          %s726 = smul.addr %s722, 128
          %s727 = scalar_lea.hbm %s7, %s726
          %s728 = sshll.u32 %s718, 4
          %s729 = int_to_ptr.vmem [resolvable:$true] %s728
          %734 = dma.vmem_to_hbm [thread:$0]  %s729, 1024, %s727, %s715, 128, 128, 8
        $region52: #{tpu_custom_call.1} parent=47 // pred_fallthru
          _
      $region48: #{tpu_custom_call.1} parent=5 // pred_fallthru
        _
      %p735 = scmp.le.s32.totalorder 2, %s16
      // Predicated region
      $region53: #{tpu_custom_call.1} parent=5 // pred_check
        %p736 = pneg %p735
      $region54: #{tpu_custom_call.1} parent=5 // pred_check_branch
        %738 = sbr.rel (%p736) target = $region56
      $region55: #{tpu_custom_call.1} parent=5 // pred_region
        %s739 = ssub.s32 %s16, 2
        // Predicated region
        $region57: #{tpu_custom_call.1} parent=55 // pred_check
          %p740 = pneg %p197
        $region58: #{tpu_custom_call.1} parent=55 // pred_check_branch
          %742 = sbr.rel (%p740) target = $region60
        $region59: #{tpu_custom_call.1} parent=55 // pred_region
          %s743 = sand.u32 %s182, 1
          %s744 = scalar_lea.sflag [#allocation5], %s743
          %s745 = sand.u32 %s182, 1
          %s746 = smul.addr %s745, 64
          %s747 = scalar_lea.vmem [#allocation4], %s746
          %748 = dma.done %s744, 1024
        $region60: #{tpu_custom_call.1} parent=55 // pred_fallthru
          _
      $region56: #{tpu_custom_call.1} parent=5 // pred_fallthru
        _
    $region6: #{tpu_custom_call.1} parent=1 // loop_footer
      %s20 = sadd.s32 1, %s16
    $region7: #{tpu_custom_call.1} parent=1 // loop_footer_branch
      %15 = sbr.rel target = $region3
    $region8: #{tpu_custom_call.1} parent=1 // loop_exit
      _
    %749 = vsyncpa [#allocation5], 1
    %s750 = scalar_lea.sflag [#allocation5], 1
    %751 = vsyncpa %s750, 1

</llo_original>
